<compile_context>
chip_gen: v5e
topology: v5e:2x2
jax: 0.10.0
libtpu: 0.0.40
codegen_flags: <defaults>
</compile_context>

<pallas_src>
import jax
import jax.numpy as jnp
from jax.experimental import pallas as pl
from jax.experimental.pallas import tpu as pltpu

EPS = 1e-5                    # nn.BatchNorm1d default eps
_LANE = 128                   # TPU lane width
_VPU_CONTRACTION_MAX_K = 8    # contractions this small skip the MXU (bottleneck layer)


def _round_up(n, m):
    return ((n + m - 1) // m) * m


def _vmem_spec():
    # Tiny problem: whole arrays resident in VMEM, single kernel invocation, no grid.
    return pl.BlockSpec(memory_space=pltpu.MemorySpace.VMEM)


# ---------------- fused kernel builder ----------------

def _build_fused_kernel(layer_kinds, layer_in_sizes):
    """Whole encoder+decoder forward in a single kernel body (layer loop unrolled).

    layer_kinds / layer_in_sizes are static Python tuples captured in the closure.
    Refs:
      x_ref  : [B, P]        padded input activations
      w_ref  : [L, P, P]     padded weights (x @ W layout)
      b_ref  : [L, 1, P]     padded biases
      g_ref  : [L, 1, P]     BatchNorm gamma (1.0 in padded / unused lanes)
      be_ref : [L, 1, P]     BatchNorm beta  (0.0 in padded / unused lanes)
      o_ref  : [B, P]        padded output
    """
    def kernel(x_ref, w_ref, b_ref, g_ref, be_ref, o_ref):
        h = x_ref[...]
        for l, (kind, in_size) in enumerate(zip(layer_kinds, layer_in_sizes)):
            w = w_ref[l]                     # [P, P]
            b = b_ref[l]                     # [1, P]
            if in_size <= _VPU_CONTRACTION_MAX_K:
                # Tiny contraction (bottleneck, K = btl_size): explicit outer product on
                # the VPU — cheaper than an MXU push/pop for 2 of 128/256 K-rows.
                acc = h[:, 0:1] * w[0, :]
                for k in range(1, in_size):
                    acc = acc + h[:, k:k + 1] * w[k, :]
                h = acc + b
            else:
                # MXU matmul (f32 operands to match the f32 PyTorch reference exactly;
                # cast to bf16 here for throughput once run at realistic widths/batches).
                h = jnp.dot(h, w, preferred_element_type=jnp.float32) + b

            if kind == "block":
                # ReLU + BatchNorm1d (training-mode batch stats), folded to scale/shift.
                h = jnp.maximum(h, 0.0)
                mean = jnp.mean(h, axis=0, keepdims=True)
                diff = h - mean
                var = jnp.mean(diff * diff, axis=0, keepdims=True)
                scale = g_ref[l] * jax.lax.rsqrt(var + EPS)   # rsqrt -> EUP slot (free)
                h = h * scale + (be_ref[l] - mean * scale)

        o_ref[...] = h
    return kernel


# ---------------- parameter construction (deterministic, PyTorch-style init) ----------------

def _init_linear(key, in_size, out_size):
    k_w, k_b = jax.random.split(key)
    bound = 1.0 / (in_size ** 0.5)
    w = jax.random.uniform(k_w, (in_size, out_size), jnp.float32, -bound, bound)
    b = jax.random.uniform(k_b, (out_size,), jnp.float32, -bound, bound)
    return w, b


class AutoEncoderPallas:
    """Mirrors AutoEncoder(input_size, output_size, hidden_sizes, btl_size, use_batch_norm=True)."""

    def __init__(self, input_size, output_size, hidden_sizes, btl_size=2, key=None):
        assert len(hidden_sizes) > 0, "You need to specify hidden layers."
        del output_size  # unused by the reference module's forward
        if key is None:
            key = jax.random.PRNGKey(0)

        # ---- static layer plan: (kind, in, out), mirrors the PyTorch module exactly ----
        plan = []
        last = input_size
        for hidden_size in hidden_sizes[1:]:                 # encoder blocks
            plan.append(("block", last, hidden_size))
            last = hidden_size
        plan.append(("linear", last, btl_size))              # encoder bottleneck linear
        last = btl_size
        for hidden_size in hidden_sizes[1::-1]:              # decoder blocks (reference slicing)
            plan.append(("block", last, hidden_size))
            last = hidden_size
        plan.append(("linear", last, input_size))            # decoder output linear

        self.input_size = input_size
        self.layer_kinds = tuple(k for k, _, _ in plan)
        self.layer_in_sizes = tuple(i for _, i, _ in plan)

        feat_max = max([input_size, btl_size] + list(hidden_sizes))
        P = _round_up(feat_max, _LANE)
        self.P = P
        L = len(plan)

        # ---- padded, stacked parameters (lane-dense, all VMEM-resident in the kernel) ----
        Ws = jnp.zeros((L, P, P), jnp.float32)
        Bs = jnp.zeros((L, 1, P), jnp.float32)
        Gs = jnp.ones((L, 1, P), jnp.float32)    # BatchNorm1d default weight (gamma)
        Bes = jnp.zeros((L, 1, P), jnp.float32)  # BatchNorm1d default bias (beta)
        for l, (kind, isz, osz) in enumerate(plan):
            key, sub = jax.random.split(key)
            w, b = _init_linear(sub, isz, osz)
            Ws = Ws.at[l, :isz, :osz].set(w)
            Bs = Bs.at[l, 0, :osz].set(b)
        self.Ws, self.Bs, self.Gs, self.Bes = Ws, Bs, Gs, Bes

        kernel = _build_fused_kernel(self.layer_kinds, self.layer_in_sizes)
        input_size_ = input_size
        P_ = P

        def forward(x, Ws, Bs, Gs, Bes):
            Bsz = x.shape[0]
            xp = jnp.zeros((Bsz, P_), jnp.float32).at[:, :input_size_].set(x)
            yp = pl.pallas_call(
                kernel,
                out_shape=jax.ShapeDtypeStruct((Bsz, P_), jnp.float32),
                in_specs=[_vmem_spec()] * 5,
                out_specs=_vmem_spec(),
            )(xp, Ws, Bs, Gs, Bes)
            return yp[:, :input_size_]

        self._forward = jax.jit(forward)

    def __call__(self, x):
        return self._forward(x, self.Ws, self.Bs, self.Gs, self.Bes)

    # Pure-JAX reference (same math, no Pallas) for correctness checking.
    def reference(self, x):
        h = x
        for l, (kind, isz) in enumerate(zip(self.layer_kinds, self.layer_in_sizes)):
            osz_mask = slice(None)  # padded math is inert; run on padded arrays directly
            w = self.Ws[l]
            b = self.Bs[l]
            if l == 0:
                h = jnp.zeros((x.shape[0], self.P), jnp.float32).at[:, :self.input_size].set(x)
            h = h @ w + b
            if kind == "block":
                h = jnp.maximum(h, 0.0)
                mean = jnp.mean(h, axis=0, keepdims=True)
                var = jnp.mean((h - mean) ** 2, axis=0, keepdims=True)
                h = (h - mean) * jax.lax.rsqrt(var + EPS) * self.Gs[l] + self.Bes[l]
        return h[:, :self.input_size]


if __name__ == "__main__":
    key = jax.random.PRNGKey(0)
    k_x, k_p = jax.random.split(key)

    B = 8
    input_size = 16
    hidden_sizes = [32, 24]
    btl_size = 2

    x = jax.random.normal(k_x, (B, input_size), dtype=jnp.float32)

    model = AutoEncoderPallas(input_size, input_size, hidden_sizes, btl_size, key=k_p)
    y = model(x)
    jax.block_until_ready(y)

    assert y.shape == (B, input_size), y.shape
    assert y.dtype == jnp.float32

    # correctness guard against the pure-JAX reference
    y_ref = model.reference(x)
    assert jnp.allclose(y, y_ref, rtol=1e-3, atol=1e-3), float(jnp.max(jnp.abs(y - y_ref)))

    print("KERNEL_OK")
</pallas_src>

<mosaic_0001>
module attributes {stable_mosaic.version = 11 : i64} {
  func.func @kernel(%arg0: memref<8x128xf32, #tpu.memory_space<vmem>>, %arg1: memref<5x128x128xf32, #tpu.memory_space<vmem>>, %arg2: memref<5x1x128xf32, #tpu.memory_space<vmem>>, %arg3: memref<5x1x128xf32, #tpu.memory_space<vmem>>, %arg4: memref<5x1x128xf32, #tpu.memory_space<vmem>>, %arg5: memref<8x128xf32, #tpu.memory_space<vmem>>) attributes {dimension_semantics = [], scalar_prefetch = 0 : i64, scratch_operands = 0 : i64, tpu.core_type = #tpu.core_type<tc>} {
    %c0 = arith.constant 0 : index
    %c0_0 = arith.constant 0 : index
    %0 = vector.load %arg0[%c0, %c0_0] : memref<8x128xf32, #tpu.memory_space<vmem>>, vector<8x128xf32>
    %c0_1 = arith.constant 0 : index
    %c0_2 = arith.constant 0 : index
    %c0_3 = arith.constant 0 : index
    %1 = vector.load %arg1[%c0_1, %c0_2, %c0_3] : memref<5x128x128xf32, #tpu.memory_space<vmem>>, vector<1x128x128xf32>
    %2 = vector.shape_cast %1 : vector<1x128x128xf32> to vector<128x128xf32>
    %c0_4 = arith.constant 0 : index
    %c0_5 = arith.constant 0 : index
    %c0_6 = arith.constant 0 : index
    %3 = vector.load %arg2[%c0_4, %c0_5, %c0_6] : memref<5x1x128xf32, #tpu.memory_space<vmem>>, vector<1x1x128xf32>
    %4 = vector.shape_cast %3 : vector<1x1x128xf32> to vector<1x128xf32>
    %cst = arith.constant dense<0.000000e+00> : vector<8x128xf32>
    %5 = tpu.matmul %0, %2, %cst {dimension_numbers = #tpu.dot_dimension_numbers<[1], [0], [0], [1], [0, 0, 1, 1], [], []>} : vector<8x128xf32>, vector<128x128xf32>, vector<8x128xf32> -> vector<8x128xf32>
    %6 = vector.broadcast %4 : vector<1x128xf32> to vector<8x128xf32>
    %7 = arith.addf %5, %6 : vector<8x128xf32>
    %cst_7 = arith.constant 0.000000e+00 : f32
    %8 = vector.broadcast %cst_7 : f32 to vector<8x128xf32>
    %9 = arith.maximumf %7, %8 : vector<8x128xf32>
    %cst_8 = arith.constant dense<0.000000e+00> : vector<128xf32>
    %10 = vector.multi_reduction <add>, %9, %cst_8 [0] : vector<8x128xf32> to vector<128xf32>
    %11 = vector.shape_cast %10 : vector<128xf32> to vector<1x128xf32>
    %cst_9 = arith.constant 8.000000e+00 : f32
    %12 = vector.broadcast %cst_9 : f32 to vector<1x128xf32>
    %13 = arith.divf %11, %12 : vector<1x128xf32>
    %14 = vector.broadcast %13 : vector<1x128xf32> to vector<8x128xf32>
    %15 = arith.subf %9, %14 : vector<8x128xf32>
    %16 = arith.mulf %15, %15 : vector<8x128xf32>
    %cst_10 = arith.constant dense<0.000000e+00> : vector<128xf32>
    %17 = vector.multi_reduction <add>, %16, %cst_10 [0] : vector<8x128xf32> to vector<128xf32>
    %18 = vector.shape_cast %17 : vector<128xf32> to vector<1x128xf32>
    %cst_11 = arith.constant 8.000000e+00 : f32
    %19 = vector.broadcast %cst_11 : f32 to vector<1x128xf32>
    %20 = arith.divf %18, %19 : vector<1x128xf32>
    %c0_12 = arith.constant 0 : index
    %c0_13 = arith.constant 0 : index
    %c0_14 = arith.constant 0 : index
    %21 = vector.load %arg3[%c0_12, %c0_13, %c0_14] : memref<5x1x128xf32, #tpu.memory_space<vmem>>, vector<1x1x128xf32>
    %22 = vector.shape_cast %21 : vector<1x1x128xf32> to vector<1x128xf32>
    %cst_15 = arith.constant 9.99999974E-6 : f32
    %23 = vector.broadcast %cst_15 : f32 to vector<1x128xf32>
    %24 = arith.addf %20, %23 : vector<1x128xf32>
    %25 = math.rsqrt %24 : vector<1x128xf32>
    %26 = arith.mulf %22, %25 : vector<1x128xf32>
    %27 = vector.broadcast %26 : vector<1x128xf32> to vector<8x128xf32>
    %28 = arith.mulf %9, %27 : vector<8x128xf32>
    %c0_16 = arith.constant 0 : index
    %c0_17 = arith.constant 0 : index
    %c0_18 = arith.constant 0 : index
    %29 = vector.load %arg4[%c0_16, %c0_17, %c0_18] : memref<5x1x128xf32, #tpu.memory_space<vmem>>, vector<1x1x128xf32>
    %30 = vector.shape_cast %29 : vector<1x1x128xf32> to vector<1x128xf32>
    %31 = arith.mulf %13, %26 : vector<1x128xf32>
    %32 = arith.subf %30, %31 : vector<1x128xf32>
    %33 = vector.broadcast %32 : vector<1x128xf32> to vector<8x128xf32>
    %34 = arith.addf %28, %33 : vector<8x128xf32>
    %c1 = arith.constant 1 : index
    %c0_19 = arith.constant 0 : index
    %c0_20 = arith.constant 0 : index
    %35 = vector.load %arg1[%c1, %c0_19, %c0_20] : memref<5x128x128xf32, #tpu.memory_space<vmem>>, vector<1x128x128xf32>
    %36 = vector.shape_cast %35 : vector<1x128x128xf32> to vector<128x128xf32>
    %c1_21 = arith.constant 1 : index
    %c0_22 = arith.constant 0 : index
    %c0_23 = arith.constant 0 : index
    %37 = vector.load %arg2[%c1_21, %c0_22, %c0_23] : memref<5x1x128xf32, #tpu.memory_space<vmem>>, vector<1x1x128xf32>
    %38 = vector.shape_cast %37 : vector<1x1x128xf32> to vector<1x128xf32>
    %cst_24 = arith.constant dense<0.000000e+00> : vector<8x128xf32>
    %39 = tpu.matmul %34, %36, %cst_24 {dimension_numbers = #tpu.dot_dimension_numbers<[1], [0], [0], [1], [0, 0, 1, 1], [], []>} : vector<8x128xf32>, vector<128x128xf32>, vector<8x128xf32> -> vector<8x128xf32>
    %40 = vector.broadcast %38 : vector<1x128xf32> to vector<8x128xf32>
    %41 = arith.addf %39, %40 : vector<8x128xf32>
    %c2 = arith.constant 2 : index
    %c0_25 = arith.constant 0 : index
    %c0_26 = arith.constant 0 : index
    %42 = vector.load %arg1[%c2, %c0_25, %c0_26] : memref<5x128x128xf32, #tpu.memory_space<vmem>>, vector<1x128x128xf32>
    %43 = vector.shape_cast %42 : vector<1x128x128xf32> to vector<128x128xf32>
    %c2_27 = arith.constant 2 : index
    %c0_28 = arith.constant 0 : index
    %c0_29 = arith.constant 0 : index
    %44 = vector.load %arg2[%c2_27, %c0_28, %c0_29] : memref<5x1x128xf32, #tpu.memory_space<vmem>>, vector<1x1x128xf32>
    %45 = vector.shape_cast %44 : vector<1x1x128xf32> to vector<1x128xf32>
    %46 = vector.extract_strided_slice %41 {offsets = [0, 0], sizes = [8, 1], strides = [1, 1]} : vector<8x128xf32> to vector<8x1xf32>
    %47 = vector.extract_strided_slice %43 {offsets = [0, 0], sizes = [1, 128], strides = [1, 1]} : vector<128x128xf32> to vector<1x128xf32>
    %48 = vector.shape_cast %47 : vector<1x128xf32> to vector<128xf32>
    %49 = vector.shape_cast %48 : vector<128xf32> to vector<1x128xf32>
    %50 = vector.broadcast %46 : vector<8x1xf32> to vector<8x128xf32>
    %51 = vector.broadcast %49 : vector<1x128xf32> to vector<8x128xf32>
    %52 = arith.mulf %50, %51 : vector<8x128xf32>
    %53 = vector.extract_strided_slice %41 {offsets = [0, 1], sizes = [8, 1], strides = [1, 1]} : vector<8x128xf32> to vector<8x1xf32>
    %54 = vector.extract_strided_slice %43 {offsets = [1, 0], sizes = [1, 128], strides = [1, 1]} : vector<128x128xf32> to vector<1x128xf32>
    %55 = vector.shape_cast %54 : vector<1x128xf32> to vector<128xf32>
    %56 = vector.shape_cast %55 : vector<128xf32> to vector<1x128xf32>
    %57 = vector.broadcast %53 : vector<8x1xf32> to vector<8x128xf32>
    %58 = vector.broadcast %56 : vector<1x128xf32> to vector<8x128xf32>
    %59 = arith.mulf %57, %58 : vector<8x128xf32>
    %60 = arith.addf %52, %59 : vector<8x128xf32>
    %61 = vector.broadcast %45 : vector<1x128xf32> to vector<8x128xf32>
    %62 = arith.addf %60, %61 : vector<8x128xf32>
    %cst_30 = arith.constant 0.000000e+00 : f32
    %63 = vector.broadcast %cst_30 : f32 to vector<8x128xf32>
    %64 = arith.maximumf %62, %63 : vector<8x128xf32>
    %cst_31 = arith.constant dense<0.000000e+00> : vector<128xf32>
    %65 = vector.multi_reduction <add>, %64, %cst_31 [0] : vector<8x128xf32> to vector<128xf32>
    %66 = vector.shape_cast %65 : vector<128xf32> to vector<1x128xf32>
    %cst_32 = arith.constant 8.000000e+00 : f32
    %67 = vector.broadcast %cst_32 : f32 to vector<1x128xf32>
    %68 = arith.divf %66, %67 : vector<1x128xf32>
    %69 = vector.broadcast %68 : vector<1x128xf32> to vector<8x128xf32>
    %70 = arith.subf %64, %69 : vector<8x128xf32>
    %71 = arith.mulf %70, %70 : vector<8x128xf32>
    %cst_33 = arith.constant dense<0.000000e+00> : vector<128xf32>
    %72 = vector.multi_reduction <add>, %71, %cst_33 [0] : vector<8x128xf32> to vector<128xf32>
    %73 = vector.shape_cast %72 : vector<128xf32> to vector<1x128xf32>
    %cst_34 = arith.constant 8.000000e+00 : f32
    %74 = vector.broadcast %cst_34 : f32 to vector<1x128xf32>
    %75 = arith.divf %73, %74 : vector<1x128xf32>
    %c2_35 = arith.constant 2 : index
    %c0_36 = arith.constant 0 : index
    %c0_37 = arith.constant 0 : index
    %76 = vector.load %arg3[%c2_35, %c0_36, %c0_37] : memref<5x1x128xf32, #tpu.memory_space<vmem>>, vector<1x1x128xf32>
    %77 = vector.shape_cast %76 : vector<1x1x128xf32> to vector<1x128xf32>
    %cst_38 = arith.constant 9.99999974E-6 : f32
    %78 = vector.broadcast %cst_38 : f32 to vector<1x128xf32>
    %79 = arith.addf %75, %78 : vector<1x128xf32>
    %80 = math.rsqrt %79 : vector<1x128xf32>
    %81 = arith.mulf %77, %80 : vector<1x128xf32>
    %82 = vector.broadcast %81 : vector<1x128xf32> to vector<8x128xf32>
    %83 = arith.mulf %64, %82 : vector<8x128xf32>
    %c2_39 = arith.constant 2 : index
    %c0_40 = arith.constant 0 : index
    %c0_41 = arith.constant 0 : index
    %84 = vector.load %arg4[%c2_39, %c0_40, %c0_41] : memref<5x1x128xf32, #tpu.memory_space<vmem>>, vector<1x1x128xf32>
    %85 = vector.shape_cast %84 : vector<1x1x128xf32> to vector<1x128xf32>
    %86 = arith.mulf %68, %81 : vector<1x128xf32>
    %87 = arith.subf %85, %86 : vector<1x128xf32>
    %88 = vector.broadcast %87 : vector<1x128xf32> to vector<8x128xf32>
    %89 = arith.addf %83, %88 : vector<8x128xf32>
    %c3 = arith.constant 3 : index
    %c0_42 = arith.constant 0 : index
    %c0_43 = arith.constant 0 : index
    %90 = vector.load %arg1[%c3, %c0_42, %c0_43] : memref<5x128x128xf32, #tpu.memory_space<vmem>>, vector<1x128x128xf32>
    %91 = vector.shape_cast %90 : vector<1x128x128xf32> to vector<128x128xf32>
    %c3_44 = arith.constant 3 : index
    %c0_45 = arith.constant 0 : index
    %c0_46 = arith.constant 0 : index
    %92 = vector.load %arg2[%c3_44, %c0_45, %c0_46] : memref<5x1x128xf32, #tpu.memory_space<vmem>>, vector<1x1x128xf32>
    %93 = vector.shape_cast %92 : vector<1x1x128xf32> to vector<1x128xf32>
    %cst_47 = arith.constant dense<0.000000e+00> : vector<8x128xf32>
    %94 = tpu.matmul %89, %91, %cst_47 {dimension_numbers = #tpu.dot_dimension_numbers<[1], [0], [0], [1], [0, 0, 1, 1], [], []>} : vector<8x128xf32>, vector<128x128xf32>, vector<8x128xf32> -> vector<8x128xf32>
    %95 = vector.broadcast %93 : vector<1x128xf32> to vector<8x128xf32>
    %96 = arith.addf %94, %95 : vector<8x128xf32>
    %cst_48 = arith.constant 0.000000e+00 : f32
    %97 = vector.broadcast %cst_48 : f32 to vector<8x128xf32>
    %98 = arith.maximumf %96, %97 : vector<8x128xf32>
    %cst_49 = arith.constant dense<0.000000e+00> : vector<128xf32>
    %99 = vector.multi_reduction <add>, %98, %cst_49 [0] : vector<8x128xf32> to vector<128xf32>
    %100 = vector.shape_cast %99 : vector<128xf32> to vector<1x128xf32>
    %cst_50 = arith.constant 8.000000e+00 : f32
    %101 = vector.broadcast %cst_50 : f32 to vector<1x128xf32>
    %102 = arith.divf %100, %101 : vector<1x128xf32>
    %103 = vector.broadcast %102 : vector<1x128xf32> to vector<8x128xf32>
    %104 = arith.subf %98, %103 : vector<8x128xf32>
    %105 = arith.mulf %104, %104 : vector<8x128xf32>
    %cst_51 = arith.constant dense<0.000000e+00> : vector<128xf32>
    %106 = vector.multi_reduction <add>, %105, %cst_51 [0] : vector<8x128xf32> to vector<128xf32>
    %107 = vector.shape_cast %106 : vector<128xf32> to vector<1x128xf32>
    %cst_52 = arith.constant 8.000000e+00 : f32
    %108 = vector.broadcast %cst_52 : f32 to vector<1x128xf32>
    %109 = arith.divf %107, %108 : vector<1x128xf32>
    %c3_53 = arith.constant 3 : index
    %c0_54 = arith.constant 0 : index
    %c0_55 = arith.constant 0 : index
    %110 = vector.load %arg3[%c3_53, %c0_54, %c0_55] : memref<5x1x128xf32, #tpu.memory_space<vmem>>, vector<1x1x128xf32>
    %111 = vector.shape_cast %110 : vector<1x1x128xf32> to vector<1x128xf32>
    %cst_56 = arith.constant 9.99999974E-6 : f32
    %112 = vector.broadcast %cst_56 : f32 to vector<1x128xf32>
    %113 = arith.addf %109, %112 : vector<1x128xf32>
    %114 = math.rsqrt %113 : vector<1x128xf32>
    %115 = arith.mulf %111, %114 : vector<1x128xf32>
    %116 = vector.broadcast %115 : vector<1x128xf32> to vector<8x128xf32>
    %117 = arith.mulf %98, %116 : vector<8x128xf32>
    %c3_57 = arith.constant 3 : index
    %c0_58 = arith.constant 0 : index
    %c0_59 = arith.constant 0 : index
    %118 = vector.load %arg4[%c3_57, %c0_58, %c0_59] : memref<5x1x128xf32, #tpu.memory_space<vmem>>, vector<1x1x128xf32>
    %119 = vector.shape_cast %118 : vector<1x1x128xf32> to vector<1x128xf32>
    %120 = arith.mulf %102, %115 : vector<1x128xf32>
    %121 = arith.subf %119, %120 : vector<1x128xf32>
    %122 = vector.broadcast %121 : vector<1x128xf32> to vector<8x128xf32>
    %123 = arith.addf %117, %122 : vector<8x128xf32>
    %c4 = arith.constant 4 : index
    %c0_60 = arith.constant 0 : index
    %c0_61 = arith.constant 0 : index
    %124 = vector.load %arg1[%c4, %c0_60, %c0_61] : memref<5x128x128xf32, #tpu.memory_space<vmem>>, vector<1x128x128xf32>
    %125 = vector.shape_cast %124 : vector<1x128x128xf32> to vector<128x128xf32>
    %c4_62 = arith.constant 4 : index
    %c0_63 = arith.constant 0 : index
    %c0_64 = arith.constant 0 : index
    %126 = vector.load %arg2[%c4_62, %c0_63, %c0_64] : memref<5x1x128xf32, #tpu.memory_space<vmem>>, vector<1x1x128xf32>
    %127 = vector.shape_cast %126 : vector<1x1x128xf32> to vector<1x128xf32>
    %cst_65 = arith.constant dense<0.000000e+00> : vector<8x128xf32>
    %128 = tpu.matmul %123, %125, %cst_65 {dimension_numbers = #tpu.dot_dimension_numbers<[1], [0], [0], [1], [0, 0, 1, 1], [], []>} : vector<8x128xf32>, vector<128x128xf32>, vector<8x128xf32> -> vector<8x128xf32>
    %129 = vector.broadcast %127 : vector<1x128xf32> to vector<8x128xf32>
    %130 = arith.addf %128, %129 : vector<8x128xf32>
    %c0_66 = arith.constant 0 : index
    %c0_67 = arith.constant 0 : index
    %131 = vector.load %arg5[%c0_66, %c0_67] : memref<8x128xf32, #tpu.memory_space<vmem>>, vector<8x128xf32>
    tpu.vector_store %arg5[%c0_66, %c0_67], %130 {strides = array<i32>} : memref<8x128xf32, #tpu.memory_space<vmem>>, vector<8x128xf32>,
    return
  }
}

</mosaic_0001>

<llo_original>
// kernel: forward.1
$region0: #{forward.1}
  #allocation0 [shape = 'u32[]', space=smem, size = 0x4, offset = 0x4, fixed_abs, tag = 'smem constant byte address 0x4 - core index']
  #allocation1 [shape = 'u32[72,128]{1,0:T(1,128)}', space=vmem, size = 0x9000, scoped, tag = 'internal scratch']
  %s0 = inlined_call_operand.vmem [shape: f32[8,128], index: 0, kind: input, shape index: {}]
  %s1 = inlined_call_operand.hbm [shape: f32[5,128,128], index: 1, kind: input, shape index: {}]
  %s2 = inlined_call_operand.vmem [shape: f32[5,1,128], index: 2, kind: input, shape index: {}]
  %s3 = inlined_call_operand.vmem [shape: f32[5,1,128], index: 3, kind: input, shape index: {}]
  %s4 = inlined_call_operand.vmem [shape: f32[5,1,128], index: 4, kind: input, shape index: {}]
  %s5 = inlined_call_operand.hbm [shape: f32[8,128], index: 5, kind: output, shape index: {}]
  %s6 = sld [smem:[#allocation0]]
  $region34: #{forward.1} parent=0
    _
  %s8 = ssub.s32 1, %s6
  %s9 = scalar_select 0, %s8, %s6
  $region1: #{forward.1} parent=0
    #allocation2 [shape = 'u8[327680]{0}', space=vmem, size = 0x50000, scoped, tag = 'input window, operand 1, single buffered']
    #allocation3 [shape = 's32[1]{0}', space=sflag, size = 0x4, scoped, tag = 'scoped memory for forward.1']
    #allocation4 [shape = 's32[1]{0}', space=sflag, size = 0x4, scoped, tag = 'scoped memory for forward.1']
    #allocation5 [shape = 'u8[4096]{0}', space=vmem, size = 0x1000, scoped, tag = 'output window, operand 0, single buffered']
    %10 = vsyncpa [#allocation3], 0
    %11 = vsyncpa [#allocation4], 0
    // Predicated region
    $region2: #{forward.1} parent=1 // pred_check
      _
    $region3: #{forward.1} parent=1 // pred_check_branch
      %13 = sbr.rel (0) target = $region5
    $region4: #{forward.1} parent=1 // pred_region
      _
    $region5: #{forward.1} parent=1 // pred_fallthru
      _
    // Predicated region
    $region6: #{forward.1} parent=1 // pred_check
      _
    $region7: #{forward.1} parent=1 // pred_check_branch
      %15 = sbr.rel (0) target = $region9
    $region8: #{forward.1} parent=1 // pred_region
      %17 = vsyncadd [#allocation3], 0
      %s18 = sshll.u32 %s1, 4
      %s19 = int_to_ptr.hbm [resolvable:$true] %s18
      %s20 = sshll.u32 [#allocation2], 4
      %s21 = int_to_ptr.vmem [resolvable:$true] %s20
      %26 = dma.hbm_to_vmem [thread:$0]  %s19, 10240, %s21, [#allocation3], 128, 128, 8
    $region9: #{forward.1} parent=1 // pred_fallthru
      _
    // Predicated region
    $region10: #{forward.1} parent=1 // pred_check
      _
    $region11: #{forward.1} parent=1 // pred_check_branch
      %28 = sbr.rel (0) target = $region13
    $region12: #{forward.1} parent=1 // pred_region
      _
    $region13: #{forward.1} parent=1 // pred_fallthru
      _
    // Predicated region
    $region14: #{forward.1} parent=1 // pred_check
      _
    $region15: #{forward.1} parent=1 // pred_check_branch
      %30 = sbr.rel (0) target = $region17
    $region16: #{forward.1} parent=1 // pred_region
      _
    $region17: #{forward.1} parent=1 // pred_fallthru
      _
    // Predicated region
    $region18: #{forward.1} parent=1 // pred_check
      _
    $region19: #{forward.1} parent=1 // pred_check_branch
      %32 = sbr.rel (0) target = $region21
    $region20: #{forward.1} parent=1 // pred_region
      _
    $region21: #{forward.1} parent=1 // pred_fallthru
      _
    // Predicated region
    $region22: #{forward.1} parent=1 // pred_check
      _
    $region23: #{forward.1} parent=1 // pred_check_branch
      %34 = sbr.rel (0) target = $region25
    $region24: #{forward.1} parent=1 // pred_region
      %36 = dma.done [#allocation3], 10240
    $region25: #{forward.1} parent=1 // pred_fallthru
      _
    %v37 = vld [vmem:[%s0] sm:$0xff]
    %v38 = vld [vmem:[#allocation2] sm:$0xff]
    %v39 = vld [vmem:[#allocation2 + $0x8] sm:$0xff]
    %v40 = vld [vmem:[#allocation2 + $0x10] sm:$0xff]
    %v41 = vld [vmem:[#allocation2 + $0x18] sm:$0xff]
    %v42 = vld [vmem:[#allocation2 + $0x20] sm:$0xff]
    %v43 = vld [vmem:[#allocation2 + $0x28] sm:$0xff]
    %v44 = vld [vmem:[#allocation2 + $0x30] sm:$0xff]
    %v45 = vld [vmem:[#allocation2 + $0x38] sm:$0xff]
    %v46 = vld [vmem:[#allocation2 + $0x40] sm:$0xff]
    %v47 = vld [vmem:[#allocation2 + $0x48] sm:$0xff]
    %v48 = vld [vmem:[#allocation2 + $0x50] sm:$0xff]
    %v49 = vld [vmem:[#allocation2 + $0x58] sm:$0xff]
    %v50 = vld [vmem:[#allocation2 + $0x60] sm:$0xff]
    %v51 = vld [vmem:[#allocation2 + $0x68] sm:$0xff]
    %v52 = vld [vmem:[#allocation2 + $0x70] sm:$0xff]
    %v53 = vld [vmem:[#allocation2 + $0x78] sm:$0xff]
    %v54 = vld [vmem:[%s2] sm:$0x1]
    %v56 = vperm.slane %v54, 0
    %58 = vmatpush.msra.mxu0 %v53
    %59 = vmatpush.msra.mxu0 %v52
    %60 = vmatpush.msra.mxu0 %v51
    %61 = vmatpush.msra.mxu0 %v50
    %62 = vmatpush.msra.mxu0 %v49
    %63 = vmatpush.msra.mxu0 %v48
    %64 = vmatpush.msra.mxu0 %v47
    %65 = vmatpush.msra.mxu0 %v46
    %66 = vmatpush.msra.mxu0 %v45
    %67 = vmatpush.msra.mxu0 %v44
    %68 = vmatpush.msra.mxu0 %v43
    %69 = vmatpush.msra.mxu0 %v42
    %70 = vmatpush.msra.mxu0 %v41
    %71 = vmatpush.msra.mxu0 %v40
    %72 = vmatpush.msra.mxu0 %v39
    %73 = vmatpush.msra.mxu0 %v38
    %74 = vmatmul.f32.gmra.mxu0 %v37
    %v75 = vpop.f32.mrf.mxu0
    %v76 = vadd.f32 %v56, %v75
    %77 = vdwg.mxu0
    %v78 = vmax.f32 %v76, 0.0
    %v79 = vrot.slane %v78, 4
    %v80 = vadd.f32 %v78, %v79
    %v81 = vrot.slane %v80, 2
    %v82 = vadd.f32 %v80, %v81
    %v83 = vrot.slane %v82, 1
    %v84 = vadd.f32 %v82, %v83
    %v85 = vrcp.pop 8.0
    %v86 = vmul.f32 8.0, %v85
    %v87 = vsub.f32 1.0, %v86
    %v88 = vmul.f32 %v85, %v87
    %v89 = vadd.f32 %v85, %v88
    %vm90 = vweird.f32 %v85
    %v91 = vsel %vm90, %v85, %v89
    %v92 = vmul.f32 %v84, %v91
    %v93 = vsub.f32 %v78, %v92
    %v94 = vmul.f32 %v93, %v93
    %v95 = vrot.slane %v94, 4
    %v96 = vadd.f32 %v94, %v95
    %v97 = vrot.slane %v96, 2
    %v98 = vadd.f32 %v96, %v97
    %v99 = vrot.slane %v98, 1
    %v100 = vadd.f32 %v98, %v99
    %v101 = vmul.f32 %v100, %v91
    %v102 = vld [vmem:[%s3] sm:$0x1]
    %v103 = vadd.f32 %v101, 1e-05
    %v104 = vrsqrt.pop %v103
    %v105 = vmul.f32 %v104, %v103
    %v106 = vmul.f32 %v105, %v104
    %v107 = vmul.f32 0.5, %v106
    %v108 = vsub.f32 1.5, %v107
    %v109 = vmul.f32 %v104, %v108
    %vm110 = vweird.f32 %v103
    %vm111 = vweird.f32 %v104
    %vm112 = vmor %vm110, %vm111
    %v113 = vsel %vm112, %v104, %v109
    %v114 = vmul.f32 %v102, %v113
    %v116 = vperm.slane %v114, 0
    %v118 = vmul.f32 %v78, %v116
    %v119 = vld [vmem:[%s4] sm:$0x1]
    %v120 = vmul.f32 %v92, %v114
    %v121 = vsub.f32 %v119, %v120
    %v123 = vperm.slane %v121, 0
    %v125 = vadd.f32 %v118, %v123
    %s126 = scalar_lea.vmem [#allocation2], 128
    %v127 = vld [vmem:[%s126] sm:$0xff]
    %v128 = vld [vmem:[%s126 + $0x8] sm:$0xff]
    %v129 = vld [vmem:[%s126 + $0x10] sm:$0xff]
    %v130 = vld [vmem:[%s126 + $0x18] sm:$0xff]
    %v131 = vld [vmem:[%s126 + $0x20] sm:$0xff]
    %v132 = vld [vmem:[%s126 + $0x28] sm:$0xff]
    %v133 = vld [vmem:[%s126 + $0x30] sm:$0xff]
    %v134 = vld [vmem:[%s126 + $0x38] sm:$0xff]
    %v135 = vld [vmem:[%s126 + $0x40] sm:$0xff]
    %v136 = vld [vmem:[%s126 + $0x48] sm:$0xff]
    %v137 = vld [vmem:[%s126 + $0x50] sm:$0xff]
    %v138 = vld [vmem:[%s126 + $0x58] sm:$0xff]
    %v139 = vld [vmem:[%s126 + $0x60] sm:$0xff]
    %v140 = vld [vmem:[%s126 + $0x68] sm:$0xff]
    %v141 = vld [vmem:[%s126 + $0x70] sm:$0xff]
    %v142 = vld [vmem:[%s126 + $0x78] sm:$0xff]
    %s143 = scalar_lea.vmem %s2, 1
    %v144 = vld [vmem:[%s143] sm:$0x1]
    %v146 = vperm.slane %v144, 0
    %148 = vmatpush.msra.mxu0 %v142
    %149 = vmatpush.msra.mxu0 %v141
    %150 = vmatpush.msra.mxu0 %v140
    %151 = vmatpush.msra.mxu0 %v139
    %152 = vmatpush.msra.mxu0 %v138
    %153 = vmatpush.msra.mxu0 %v137
    %154 = vmatpush.msra.mxu0 %v136
    %155 = vmatpush.msra.mxu0 %v135
    %156 = vmatpush.msra.mxu0 %v134
    %157 = vmatpush.msra.mxu0 %v133
    %158 = vmatpush.msra.mxu0 %v132
    %159 = vmatpush.msra.mxu0 %v131
    %160 = vmatpush.msra.mxu0 %v130
    %161 = vmatpush.msra.mxu0 %v129
    %162 = vmatpush.msra.mxu0 %v128
    %163 = vmatpush.msra.mxu0 %v127
    %164 = vmatmul.f32.gmra.mxu0 %v125
    %v165 = vpop.f32.mrf.mxu0
    %v166 = vadd.f32 %v146, %v165
    %167 = vdwg.mxu0
    %s168 = scalar_lea.vmem [#allocation2], 256
    %v169 = vld [vmem:[%s168] sm:$0xff]
    %s170 = scalar_lea.vmem %s2, 2
    %v171 = vld [vmem:[%s170] sm:$0x1]
    %173 = vset.pattern.permute.xlu0 0
    %174 = vperm.xlu0 %173, %v166
    %v175 = vpop.permute.xlu0 %174
    %v177 = vperm.slane %v169, 0
    %v178 = vmul.f32 %v175, %v177
    %179 = vset.pattern.permute.xlu0 1
    %180 = vperm.xlu0 %179, %v166
    %v181 = vpop.permute.xlu0 %180
    %v183 = vperm.slane %v169, 1
    %v184 = vmul.f32 %v181, %v183
    %v185 = vadd.f32 %v178, %v184
    %v187 = vperm.slane %v171, 0
    %v189 = vadd.f32 %v185, %v187
    %v190 = vmax.f32 %v189, 0.0
    %v191 = vrot.slane %v190, 4
    %v192 = vadd.f32 %v190, %v191
    %v193 = vrot.slane %v192, 2
    %v194 = vadd.f32 %v192, %v193
    %v195 = vrot.slane %v194, 1
    %v196 = vadd.f32 %v194, %v195
    %v197 = vmul.f32 %v196, %v91
    %v198 = vsub.f32 %v190, %v197
    %v199 = vmul.f32 %v198, %v198
    %v200 = vrot.slane %v199, 4
    %v201 = vadd.f32 %v199, %v200
    %v202 = vrot.slane %v201, 2
    %v203 = vadd.f32 %v201, %v202
    %v204 = vrot.slane %v203, 1
    %v205 = vadd.f32 %v203, %v204
    %v206 = vmul.f32 %v205, %v91
    %s207 = scalar_lea.vmem %s3, 2
    %v208 = vld [vmem:[%s207] sm:$0x1]
    %v209 = vadd.f32 %v206, 1e-05
    %v210 = vrsqrt.pop %v209
    %v211 = vmul.f32 %v210, %v209
    %v212 = vmul.f32 %v211, %v210
    %v213 = vmul.f32 0.5, %v212
    %v214 = vsub.f32 1.5, %v213
    %v215 = vmul.f32 %v210, %v214
    %vm216 = vweird.f32 %v209
    %vm217 = vweird.f32 %v210
    %vm218 = vmor %vm216, %vm217
    %v219 = vsel %vm218, %v210, %v215
    %v220 = vmul.f32 %v208, %v219
    %v222 = vperm.slane %v220, 0
    %v224 = vmul.f32 %v190, %v222
    %s225 = scalar_lea.vmem %s4, 2
    %v226 = vld [vmem:[%s225] sm:$0x1]
    %v227 = vmul.f32 %v197, %v220
    %v228 = vsub.f32 %v226, %v227
    %v230 = vperm.slane %v228, 0
    %v232 = vadd.f32 %v224, %v230
    %s233 = scalar_lea.vmem [#allocation2], 384
    %v234 = vld [vmem:[%s233] sm:$0xff]
    %v235 = vld [vmem:[%s233 + $0x8] sm:$0xff]
    %v236 = vld [vmem:[%s233 + $0x10] sm:$0xff]
    %v237 = vld [vmem:[%s233 + $0x18] sm:$0xff]
    %v238 = vld [vmem:[%s233 + $0x20] sm:$0xff]
    %v239 = vld [vmem:[%s233 + $0x28] sm:$0xff]
    %v240 = vld [vmem:[%s233 + $0x30] sm:$0xff]
    %v241 = vld [vmem:[%s233 + $0x38] sm:$0xff]
    %v242 = vld [vmem:[%s233 + $0x40] sm:$0xff]
    %v243 = vld [vmem:[%s233 + $0x48] sm:$0xff]
    %v244 = vld [vmem:[%s233 + $0x50] sm:$0xff]
    %v245 = vld [vmem:[%s233 + $0x58] sm:$0xff]
    %v246 = vld [vmem:[%s233 + $0x60] sm:$0xff]
    %v247 = vld [vmem:[%s233 + $0x68] sm:$0xff]
    %v248 = vld [vmem:[%s233 + $0x70] sm:$0xff]
    %v249 = vld [vmem:[%s233 + $0x78] sm:$0xff]
    %s250 = scalar_lea.vmem %s2, 3
    %v251 = vld [vmem:[%s250] sm:$0x1]
    %v253 = vperm.slane %v251, 0
    %255 = vmatpush.msra.mxu0 %v249
    %256 = vmatpush.msra.mxu0 %v248
    %257 = vmatpush.msra.mxu0 %v247
    %258 = vmatpush.msra.mxu0 %v246
    %259 = vmatpush.msra.mxu0 %v245
    %260 = vmatpush.msra.mxu0 %v244
    %261 = vmatpush.msra.mxu0 %v243
    %262 = vmatpush.msra.mxu0 %v242
    %263 = vmatpush.msra.mxu0 %v241
    %264 = vmatpush.msra.mxu0 %v240
    %265 = vmatpush.msra.mxu0 %v239
    %266 = vmatpush.msra.mxu0 %v238
    %267 = vmatpush.msra.mxu0 %v237
    %268 = vmatpush.msra.mxu0 %v236
    %269 = vmatpush.msra.mxu0 %v235
    %270 = vmatpush.msra.mxu0 %v234
    %271 = vmatmul.f32.gmra.mxu0 %v232
    %v272 = vpop.f32.mrf.mxu0
    %v273 = vadd.f32 %v253, %v272
    %274 = vdwg.mxu0
    %v275 = vmax.f32 %v273, 0.0
    %v276 = vrot.slane %v275, 4
    %v277 = vadd.f32 %v275, %v276
    %v278 = vrot.slane %v277, 2
    %v279 = vadd.f32 %v277, %v278
    %v280 = vrot.slane %v279, 1
    %v281 = vadd.f32 %v279, %v280
    %v282 = vmul.f32 %v281, %v91
    %v283 = vsub.f32 %v275, %v282
    %v284 = vmul.f32 %v283, %v283
    %v285 = vrot.slane %v284, 4
    %v286 = vadd.f32 %v284, %v285
    %v287 = vrot.slane %v286, 2
    %v288 = vadd.f32 %v286, %v287
    %v289 = vrot.slane %v288, 1
    %v290 = vadd.f32 %v288, %v289
    %v291 = vmul.f32 %v290, %v91
    %s292 = scalar_lea.vmem %s3, 3
    %v293 = vld [vmem:[%s292] sm:$0x1]
    %v294 = vadd.f32 %v291, 1e-05
    %v295 = vrsqrt.pop %v294
    %v296 = vmul.f32 %v295, %v294
    %v297 = vmul.f32 %v296, %v295
    %v298 = vmul.f32 0.5, %v297
    %v299 = vsub.f32 1.5, %v298
    %v300 = vmul.f32 %v295, %v299
    %vm301 = vweird.f32 %v294
    %vm302 = vweird.f32 %v295
    %vm303 = vmor %vm301, %vm302
    %v304 = vsel %vm303, %v295, %v300
    %v305 = vmul.f32 %v293, %v304
    %v307 = vperm.slane %v305, 0
    %v309 = vmul.f32 %v275, %v307
    %s310 = scalar_lea.vmem %s4, 3
    %v311 = vld [vmem:[%s310] sm:$0x1]
    %v312 = vmul.f32 %v282, %v305
    %v313 = vsub.f32 %v311, %v312
    %v315 = vperm.slane %v313, 0
    %v317 = vadd.f32 %v309, %v315
    %s318 = scalar_lea.vmem [#allocation2], 512
    %v319 = vld [vmem:[%s318] sm:$0xff]
    %v320 = vld [vmem:[%s318 + $0x8] sm:$0xff]
    %v321 = vld [vmem:[%s318 + $0x10] sm:$0xff]
    %v322 = vld [vmem:[%s318 + $0x18] sm:$0xff]
    %v323 = vld [vmem:[%s318 + $0x20] sm:$0xff]
    %v324 = vld [vmem:[%s318 + $0x28] sm:$0xff]
    %v325 = vld [vmem:[%s318 + $0x30] sm:$0xff]
    %v326 = vld [vmem:[%s318 + $0x38] sm:$0xff]
    %v327 = vld [vmem:[%s318 + $0x40] sm:$0xff]
    %v328 = vld [vmem:[%s318 + $0x48] sm:$0xff]
    %v329 = vld [vmem:[%s318 + $0x50] sm:$0xff]
    %v330 = vld [vmem:[%s318 + $0x58] sm:$0xff]
    %v331 = vld [vmem:[%s318 + $0x60] sm:$0xff]
    %v332 = vld [vmem:[%s318 + $0x68] sm:$0xff]
    %v333 = vld [vmem:[%s318 + $0x70] sm:$0xff]
    %v334 = vld [vmem:[%s318 + $0x78] sm:$0xff]
    %s335 = scalar_lea.vmem %s2, 4
    %v336 = vld [vmem:[%s335] sm:$0x1]
    %v338 = vperm.slane %v336, 0
    %340 = vmatpush.msra.mxu0 %v334
    %341 = vmatpush.msra.mxu0 %v333
    %342 = vmatpush.msra.mxu0 %v332
    %343 = vmatpush.msra.mxu0 %v331
    %344 = vmatpush.msra.mxu0 %v330
    %345 = vmatpush.msra.mxu0 %v329
    %346 = vmatpush.msra.mxu0 %v328
    %347 = vmatpush.msra.mxu0 %v327
    %348 = vmatpush.msra.mxu0 %v326
    %349 = vmatpush.msra.mxu0 %v325
    %350 = vmatpush.msra.mxu0 %v324
    %351 = vmatpush.msra.mxu0 %v323
    %352 = vmatpush.msra.mxu0 %v322
    %353 = vmatpush.msra.mxu0 %v321
    %354 = vmatpush.msra.mxu0 %v320
    %355 = vmatpush.msra.mxu0 %v319
    %356 = vmatmul.f32.gmra.mxu0 %v317
    %v357 = vpop.f32.mrf.mxu0
    %v358 = vadd.f32 %v338, %v357
    %359 = vdwg.mxu0
    %360 = vst [vmem:[#allocation5] sm:$0xff] %v358
    // Predicated region
    $region26: #{forward.1} parent=1 // pred_check
      _
    $region27: #{forward.1} parent=1 // pred_check_branch
      %362 = sbr.rel (0) target = $region29
    $region28: #{forward.1} parent=1 // pred_region
      %364 = vsyncadd [#allocation4], 0
      %s366 = sshll.u32 [#allocation5], 4
      %s367 = int_to_ptr.vmem [resolvable:$true] %s366
      %s368 = sshll.u32 %s5, 4
      %s369 = int_to_ptr.hbm [resolvable:$true] %s368
      %371 = dma.vmem_to_hbm [thread:$0]  %s367, 128, %s369, [#allocation4]
    $region29: #{forward.1} parent=1 // pred_fallthru
      _
    // Predicated region
    $region30: #{forward.1} parent=1 // pred_check
      _
    $region31: #{forward.1} parent=1 // pred_check_branch
      %373 = sbr.rel (0) target = $region33
    $region32: #{forward.1} parent=1 // pred_region
      %375 = dma.done [#allocation4], 128
    $region33: #{forward.1} parent=1 // pred_fallthru
      _
    %376 = vsyncpa [#allocation3], 1
    %377 = vsyncpa [#allocation4], 1

</llo_original>
